<compile_context>
chip_gen: v7x
topology: tpu7x:2x2x1
jax: 0.10.0
libtpu: 0.0.40
codegen_flags: <defaults>
</compile_context>

<pallas_src>
import jax
import jax.numpy as jnp
from jax import lax
from jax.experimental import pallas as pl
from jax.experimental.pallas import tpu as pltpu


def lstm_pred_kernel(seq_ref, slab_ref, out_ref):
    T, in_pad = seq_ref.shape
    H = slab_ref.shape[1] // 4  # slab lane dim is 4H

    # Unpack the packed parameter slab (static, tile-friendly row slices).
    whh = slab_ref[0:H, :]                                    # (H, 4H)
    wih = slab_ref[H:H + in_pad, :]                           # (in_pad, 4H)
    bias = slab_ref[H + in_pad:H + in_pad + 1, :]             # (1, 4H) = b_ih+b_hh
    wb_row = slab_ref[H + in_pad + 1:H + in_pad + 2, :]       # (1, 4H)
    wout_row = wb_row[:, 0:H]                                 # (1, H) lane-dense
    bout = wb_row[:, H:H + 1]                                 # (1, 1)

    # Hoisted, time-independent input projection + fused bias:
    # one (T, in_pad) x (in_pad, 4H) MXU matmul replaces T M=1 matmuls.
    xw = jnp.dot(seq_ref[...], wih,
                 preferred_element_type=jnp.float32) + bias   # (T, 4H)

    h = jnp.zeros((1, H), jnp.float32)                        # init_hidden(): zeros
    c = jnp.zeros((1, H), jnp.float32)
    h_list = []

    # T is a small compile-time constant: fully unroll the serial recurrence.
    for t in range(T):
        gates = xw[t:t + 1, :] + jnp.dot(
            h, whh, preferred_element_type=jnp.float32)       # (1, 4H), order i,f,g,o
        # Two full-width (4H-lane) EUP transcendentals + cheap lane slices.
        sig_all = jax.nn.sigmoid(gates)
        tanh_all = jnp.tanh(gates)
        i_g = sig_all[:, 0 * H:1 * H]
        f_g = sig_all[:, 1 * H:2 * H]
        g_g = tanh_all[:, 2 * H:3 * H]
        o_g = sig_all[:, 3 * H:4 * H]
        c = f_g * c + i_g * g_g
        h = o_g * jnp.tanh(c)
        h_list.append(h)                                      # stays in vregs

    # hidden2out: VPU multiply + XLU lane reduce (no degenerate N=1 MXU matmul,
    # no VMEM round-trip for the hidden states), single lane-dense-weight pass.
    hs = jnp.concatenate(h_list, axis=0)                      # (T, H)
    out_ref[...] = jnp.sum(hs * wout_row, axis=-1, keepdims=True) + bout


def pack_lstm_params(w_ih, w_hh, b_ih, b_hh, w_out, b_out, in_pad):
    """Pack all LSTMpred parameters into one (H + in_pad + 2, 4H) f32 slab."""
    H = w_hh.shape[1]
    H4 = 4 * H
    IN = w_ih.shape[1]
    whh_t = jnp.transpose(w_hh).astype(jnp.float32)                    # (H, 4H)
    wih_t = jnp.transpose(w_ih).astype(jnp.float32)                    # (IN, 4H)
    wih_pad = jnp.pad(wih_t, ((0, in_pad - IN), (0, 0)))               # (in_pad, 4H)
    bias = (b_ih + b_hh).reshape(1, H4).astype(jnp.float32)            # (1, 4H)
    wb_row = jnp.zeros((1, H4), jnp.float32)
    wb_row = wb_row.at[0, :H].set(w_out.reshape(H).astype(jnp.float32))
    wb_row = wb_row.at[0, H].set(b_out.reshape(()).astype(jnp.float32))
    return jnp.concatenate([whh_t, wih_pad, bias, wb_row], axis=0)


def lstm_pred_forward(seq, w_ih, w_hh, b_ih, b_hh, w_out, b_out):
    """seq: (T, input_size); weights in PyTorch layout:
       w_ih (4H, in), w_hh (4H, H), b_ih/b_hh (4H,), w_out (1, H), b_out (1,)."""
    T, IN = seq.shape
    in_pad = max(8, ((IN + 7) // 8) * 8)       # zero-pad K so slab rows stay tile-aligned
    seq_p = jnp.pad(seq.astype(jnp.float32), ((0, 0), (0, in_pad - IN)))
    slab = pack_lstm_params(w_ih, w_hh, b_ih, b_hh, w_out, b_out, in_pad)

    vmem_spec = pl.BlockSpec(memory_space=pltpu.MemorySpace.VMEM)
    return pl.pallas_call(
        lstm_pred_kernel,
        out_shape=jax.ShapeDtypeStruct((T, 1), jnp.float32),
        in_specs=[vmem_spec, vmem_spec],       # 2 input DMAs: seq + packed slab
        out_specs=vmem_spec,
    )(seq_p, slab)


def lstm_pred_reference(seq, w_ih, w_hh, b_ih, b_hh, w_out, b_out):
    """Pure-JAX reference replicating torch.nn.LSTM (batch=1) + Linear."""
    H = w_hh.shape[1]
    h = jnp.zeros((H,), jnp.float32)
    c = jnp.zeros((H,), jnp.float32)

    def step(carry, x_t):
        h, c = carry
        gates = w_ih @ x_t + b_ih + w_hh @ h + b_hh
        i = jax.nn.sigmoid(gates[0 * H:1 * H])
        f = jax.nn.sigmoid(gates[1 * H:2 * H])
        g = jnp.tanh(gates[2 * H:3 * H])
        o = jax.nn.sigmoid(gates[3 * H:4 * H])
        c_new = f * c + i * g
        h_new = o * jnp.tanh(c_new)
        return (h_new, c_new), h_new

    (_, _), hs = lax.scan(step, (h, c), seq.astype(jnp.float32))
    return hs @ w_out.T + b_out                                  # (T, 1)


if __name__ == "__main__":
    T = 8            # sequence length
    INPUT_SIZE = 4   # LSTMpred(input_size=4, hidden_dim=32)
    H = 32

    key = jax.random.PRNGKey(0)
    ks = jax.random.split(key, 8)
    bound = 1.0 / jnp.sqrt(H)
    u = lambda k, shape: jax.random.uniform(k, shape, jnp.float32, -bound, bound)

    # Deterministic synthetic parameters (PyTorch default-init style, gate order i,f,g,o).
    w_ih = u(ks[0], (4 * H, INPUT_SIZE))
    w_hh = u(ks[1], (4 * H, H))
    b_ih = u(ks[2], (4 * H,))
    b_hh = u(ks[3], (4 * H,))
    w_out = u(ks[4], (1, H))
    b_out = u(ks[5], (1,))

    seq = jax.random.normal(ks[6], (T, INPUT_SIZE), jnp.float32)

    out = lstm_pred_forward(seq, w_ih, w_hh, b_ih, b_hh, w_out, b_out)
    out = jax.block_until_ready(out)

    ref = lstm_pred_reference(seq, w_ih, w_hh, b_ih, b_hh, w_out, b_out)
    assert out.shape == (T, 1)
    assert jnp.allclose(out, ref, atol=1e-5, rtol=1e-5), (out, ref)

    print("KERNEL_OK")
</pallas_src>

<mosaic_0001>
module attributes {stable_mosaic.version = 11 : i64} {
  func.func @lstm_pred_kernel(%arg0: memref<8x8xf32, #tpu.memory_space<vmem>>, %arg1: memref<42x128xf32, #tpu.memory_space<vmem>>, %arg2: memref<8x1xf32, #tpu.memory_space<vmem>>) attributes {dimension_semantics = [], scalar_prefetch = 0 : i64, scratch_operands = 0 : i64, tpu.core_type = #tpu.core_type<tc>} {
    %c0 = arith.constant 0 : index
    %c0_0 = arith.constant 0 : index
    %0 = vector.load %arg1[%c0, %c0_0] : memref<42x128xf32, #tpu.memory_space<vmem>>, vector<32x128xf32>
    %c32 = arith.constant 32 : index
    %c0_1 = arith.constant 0 : index
    %1 = vector.load %arg1[%c32, %c0_1] : memref<42x128xf32, #tpu.memory_space<vmem>>, vector<8x128xf32>
    %c40 = arith.constant 40 : index
    %c0_2 = arith.constant 0 : index
    %2 = vector.load %arg1[%c40, %c0_2] : memref<42x128xf32, #tpu.memory_space<vmem>>, vector<1x128xf32>
    %c41 = arith.constant 41 : index
    %c0_3 = arith.constant 0 : index
    %3 = vector.load %arg1[%c41, %c0_3] : memref<42x128xf32, #tpu.memory_space<vmem>>, vector<1x128xf32>
    %4 = vector.extract_strided_slice %3 {offsets = [0, 0], sizes = [1, 32], strides = [1, 1]} : vector<1x128xf32> to vector<1x32xf32>
    %5 = vector.extract_strided_slice %3 {offsets = [0, 32], sizes = [1, 1], strides = [1, 1]} : vector<1x128xf32> to vector<1x1xf32>
    %c0_4 = arith.constant 0 : index
    %c0_5 = arith.constant 0 : index
    %6 = vector.load %arg0[%c0_4, %c0_5] : memref<8x8xf32, #tpu.memory_space<vmem>>, vector<8x8xf32>
    %cst = arith.constant dense<0.000000e+00> : vector<8x128xf32>
    %7 = tpu.matmul %6, %1, %cst {dimension_numbers = #tpu.dot_dimension_numbers<[1], [0], [0], [1], [0, 0, 1, 1], [], []>} : vector<8x8xf32>, vector<8x128xf32>, vector<8x128xf32> -> vector<8x128xf32>
    %8 = vector.broadcast %2 : vector<1x128xf32> to vector<8x128xf32>
    %9 = arith.addf %7, %8 : vector<8x128xf32>
    %cst_6 = arith.constant 0.000000e+00 : f32
    %10 = vector.broadcast %cst_6 : f32 to vector<1x32xf32>
    %cst_7 = arith.constant 0.000000e+00 : f32
    %11 = vector.broadcast %cst_7 : f32 to vector<1x32xf32>
    %12 = vector.extract_strided_slice %9 {offsets = [0, 0], sizes = [1, 128], strides = [1, 1]} : vector<8x128xf32> to vector<1x128xf32>
    %cst_8 = arith.constant dense<0.000000e+00> : vector<1x128xf32>
    %13 = tpu.matmul %10, %0, %cst_8 {dimension_numbers = #tpu.dot_dimension_numbers<[1], [0], [0], [1], [0, 0, 1, 1], [], []>} : vector<1x32xf32>, vector<32x128xf32>, vector<1x128xf32> -> vector<1x128xf32>
    %14 = arith.addf %12, %13 : vector<1x128xf32>
    %15 = arith.negf %14 : vector<1x128xf32>
    %16 = math.exp %15 : vector<1x128xf32>
    %cst_9 = arith.constant 1.000000e+00 : f32
    %17 = vector.broadcast %cst_9 : f32 to vector<1x128xf32>
    %18 = arith.addf %17, %16 : vector<1x128xf32>
    %19 = arith.divf %17, %18 : vector<1x128xf32>
    %20 = math.tanh %14 : vector<1x128xf32>
    %21 = vector.extract_strided_slice %19 {offsets = [0, 0], sizes = [1, 32], strides = [1, 1]} : vector<1x128xf32> to vector<1x32xf32>
    %22 = vector.extract_strided_slice %19 {offsets = [0, 32], sizes = [1, 32], strides = [1, 1]} : vector<1x128xf32> to vector<1x32xf32>
    %23 = vector.extract_strided_slice %20 {offsets = [0, 64], sizes = [1, 32], strides = [1, 1]} : vector<1x128xf32> to vector<1x32xf32>
    %24 = vector.extract_strided_slice %19 {offsets = [0, 96], sizes = [1, 32], strides = [1, 1]} : vector<1x128xf32> to vector<1x32xf32>
    %25 = arith.mulf %22, %11 : vector<1x32xf32>
    %26 = arith.mulf %21, %23 : vector<1x32xf32>
    %27 = arith.addf %25, %26 : vector<1x32xf32>
    %28 = math.tanh %27 : vector<1x32xf32>
    %29 = arith.mulf %24, %28 : vector<1x32xf32>
    %30 = vector.extract_strided_slice %9 {offsets = [1, 0], sizes = [1, 128], strides = [1, 1]} : vector<8x128xf32> to vector<1x128xf32>
    %cst_10 = arith.constant dense<0.000000e+00> : vector<1x128xf32>
    %31 = tpu.matmul %29, %0, %cst_10 {dimension_numbers = #tpu.dot_dimension_numbers<[1], [0], [0], [1], [0, 0, 1, 1], [], []>} : vector<1x32xf32>, vector<32x128xf32>, vector<1x128xf32> -> vector<1x128xf32>
    %32 = arith.addf %30, %31 : vector<1x128xf32>
    %33 = arith.negf %32 : vector<1x128xf32>
    %34 = math.exp %33 : vector<1x128xf32>
    %cst_11 = arith.constant 1.000000e+00 : f32
    %35 = vector.broadcast %cst_11 : f32 to vector<1x128xf32>
    %36 = arith.addf %35, %34 : vector<1x128xf32>
    %37 = arith.divf %35, %36 : vector<1x128xf32>
    %38 = math.tanh %32 : vector<1x128xf32>
    %39 = vector.extract_strided_slice %37 {offsets = [0, 0], sizes = [1, 32], strides = [1, 1]} : vector<1x128xf32> to vector<1x32xf32>
    %40 = vector.extract_strided_slice %37 {offsets = [0, 32], sizes = [1, 32], strides = [1, 1]} : vector<1x128xf32> to vector<1x32xf32>
    %41 = vector.extract_strided_slice %38 {offsets = [0, 64], sizes = [1, 32], strides = [1, 1]} : vector<1x128xf32> to vector<1x32xf32>
    %42 = vector.extract_strided_slice %37 {offsets = [0, 96], sizes = [1, 32], strides = [1, 1]} : vector<1x128xf32> to vector<1x32xf32>
    %43 = arith.mulf %40, %27 : vector<1x32xf32>
    %44 = arith.mulf %39, %41 : vector<1x32xf32>
    %45 = arith.addf %43, %44 : vector<1x32xf32>
    %46 = math.tanh %45 : vector<1x32xf32>
    %47 = arith.mulf %42, %46 : vector<1x32xf32>
    %48 = vector.extract_strided_slice %9 {offsets = [2, 0], sizes = [1, 128], strides = [1, 1]} : vector<8x128xf32> to vector<1x128xf32>
    %cst_12 = arith.constant dense<0.000000e+00> : vector<1x128xf32>
    %49 = tpu.matmul %47, %0, %cst_12 {dimension_numbers = #tpu.dot_dimension_numbers<[1], [0], [0], [1], [0, 0, 1, 1], [], []>} : vector<1x32xf32>, vector<32x128xf32>, vector<1x128xf32> -> vector<1x128xf32>
    %50 = arith.addf %48, %49 : vector<1x128xf32>
    %51 = arith.negf %50 : vector<1x128xf32>
    %52 = math.exp %51 : vector<1x128xf32>
    %cst_13 = arith.constant 1.000000e+00 : f32
    %53 = vector.broadcast %cst_13 : f32 to vector<1x128xf32>
    %54 = arith.addf %53, %52 : vector<1x128xf32>
    %55 = arith.divf %53, %54 : vector<1x128xf32>
    %56 = math.tanh %50 : vector<1x128xf32>
    %57 = vector.extract_strided_slice %55 {offsets = [0, 0], sizes = [1, 32], strides = [1, 1]} : vector<1x128xf32> to vector<1x32xf32>
    %58 = vector.extract_strided_slice %55 {offsets = [0, 32], sizes = [1, 32], strides = [1, 1]} : vector<1x128xf32> to vector<1x32xf32>
    %59 = vector.extract_strided_slice %56 {offsets = [0, 64], sizes = [1, 32], strides = [1, 1]} : vector<1x128xf32> to vector<1x32xf32>
    %60 = vector.extract_strided_slice %55 {offsets = [0, 96], sizes = [1, 32], strides = [1, 1]} : vector<1x128xf32> to vector<1x32xf32>
    %61 = arith.mulf %58, %45 : vector<1x32xf32>
    %62 = arith.mulf %57, %59 : vector<1x32xf32>
    %63 = arith.addf %61, %62 : vector<1x32xf32>
    %64 = math.tanh %63 : vector<1x32xf32>
    %65 = arith.mulf %60, %64 : vector<1x32xf32>
    %66 = vector.extract_strided_slice %9 {offsets = [3, 0], sizes = [1, 128], strides = [1, 1]} : vector<8x128xf32> to vector<1x128xf32>
    %cst_14 = arith.constant dense<0.000000e+00> : vector<1x128xf32>
    %67 = tpu.matmul %65, %0, %cst_14 {dimension_numbers = #tpu.dot_dimension_numbers<[1], [0], [0], [1], [0, 0, 1, 1], [], []>} : vector<1x32xf32>, vector<32x128xf32>, vector<1x128xf32> -> vector<1x128xf32>
    %68 = arith.addf %66, %67 : vector<1x128xf32>
    %69 = arith.negf %68 : vector<1x128xf32>
    %70 = math.exp %69 : vector<1x128xf32>
    %cst_15 = arith.constant 1.000000e+00 : f32
    %71 = vector.broadcast %cst_15 : f32 to vector<1x128xf32>
    %72 = arith.addf %71, %70 : vector<1x128xf32>
    %73 = arith.divf %71, %72 : vector<1x128xf32>
    %74 = math.tanh %68 : vector<1x128xf32>
    %75 = vector.extract_strided_slice %73 {offsets = [0, 0], sizes = [1, 32], strides = [1, 1]} : vector<1x128xf32> to vector<1x32xf32>
    %76 = vector.extract_strided_slice %73 {offsets = [0, 32], sizes = [1, 32], strides = [1, 1]} : vector<1x128xf32> to vector<1x32xf32>
    %77 = vector.extract_strided_slice %74 {offsets = [0, 64], sizes = [1, 32], strides = [1, 1]} : vector<1x128xf32> to vector<1x32xf32>
    %78 = vector.extract_strided_slice %73 {offsets = [0, 96], sizes = [1, 32], strides = [1, 1]} : vector<1x128xf32> to vector<1x32xf32>
    %79 = arith.mulf %76, %63 : vector<1x32xf32>
    %80 = arith.mulf %75, %77 : vector<1x32xf32>
    %81 = arith.addf %79, %80 : vector<1x32xf32>
    %82 = math.tanh %81 : vector<1x32xf32>
    %83 = arith.mulf %78, %82 : vector<1x32xf32>
    %84 = vector.extract_strided_slice %9 {offsets = [4, 0], sizes = [1, 128], strides = [1, 1]} : vector<8x128xf32> to vector<1x128xf32>
    %cst_16 = arith.constant dense<0.000000e+00> : vector<1x128xf32>
    %85 = tpu.matmul %83, %0, %cst_16 {dimension_numbers = #tpu.dot_dimension_numbers<[1], [0], [0], [1], [0, 0, 1, 1], [], []>} : vector<1x32xf32>, vector<32x128xf32>, vector<1x128xf32> -> vector<1x128xf32>
    %86 = arith.addf %84, %85 : vector<1x128xf32>
    %87 = arith.negf %86 : vector<1x128xf32>
    %88 = math.exp %87 : vector<1x128xf32>
    %cst_17 = arith.constant 1.000000e+00 : f32
    %89 = vector.broadcast %cst_17 : f32 to vector<1x128xf32>
    %90 = arith.addf %89, %88 : vector<1x128xf32>
    %91 = arith.divf %89, %90 : vector<1x128xf32>
    %92 = math.tanh %86 : vector<1x128xf32>
    %93 = vector.extract_strided_slice %91 {offsets = [0, 0], sizes = [1, 32], strides = [1, 1]} : vector<1x128xf32> to vector<1x32xf32>
    %94 = vector.extract_strided_slice %91 {offsets = [0, 32], sizes = [1, 32], strides = [1, 1]} : vector<1x128xf32> to vector<1x32xf32>
    %95 = vector.extract_strided_slice %92 {offsets = [0, 64], sizes = [1, 32], strides = [1, 1]} : vector<1x128xf32> to vector<1x32xf32>
    %96 = vector.extract_strided_slice %91 {offsets = [0, 96], sizes = [1, 32], strides = [1, 1]} : vector<1x128xf32> to vector<1x32xf32>
    %97 = arith.mulf %94, %81 : vector<1x32xf32>
    %98 = arith.mulf %93, %95 : vector<1x32xf32>
    %99 = arith.addf %97, %98 : vector<1x32xf32>
    %100 = math.tanh %99 : vector<1x32xf32>
    %101 = arith.mulf %96, %100 : vector<1x32xf32>
    %102 = vector.extract_strided_slice %9 {offsets = [5, 0], sizes = [1, 128], strides = [1, 1]} : vector<8x128xf32> to vector<1x128xf32>
    %cst_18 = arith.constant dense<0.000000e+00> : vector<1x128xf32>
    %103 = tpu.matmul %101, %0, %cst_18 {dimension_numbers = #tpu.dot_dimension_numbers<[1], [0], [0], [1], [0, 0, 1, 1], [], []>} : vector<1x32xf32>, vector<32x128xf32>, vector<1x128xf32> -> vector<1x128xf32>
    %104 = arith.addf %102, %103 : vector<1x128xf32>
    %105 = arith.negf %104 : vector<1x128xf32>
    %106 = math.exp %105 : vector<1x128xf32>
    %cst_19 = arith.constant 1.000000e+00 : f32
    %107 = vector.broadcast %cst_19 : f32 to vector<1x128xf32>
    %108 = arith.addf %107, %106 : vector<1x128xf32>
    %109 = arith.divf %107, %108 : vector<1x128xf32>
    %110 = math.tanh %104 : vector<1x128xf32>
    %111 = vector.extract_strided_slice %109 {offsets = [0, 0], sizes = [1, 32], strides = [1, 1]} : vector<1x128xf32> to vector<1x32xf32>
    %112 = vector.extract_strided_slice %109 {offsets = [0, 32], sizes = [1, 32], strides = [1, 1]} : vector<1x128xf32> to vector<1x32xf32>
    %113 = vector.extract_strided_slice %110 {offsets = [0, 64], sizes = [1, 32], strides = [1, 1]} : vector<1x128xf32> to vector<1x32xf32>
    %114 = vector.extract_strided_slice %109 {offsets = [0, 96], sizes = [1, 32], strides = [1, 1]} : vector<1x128xf32> to vector<1x32xf32>
    %115 = arith.mulf %112, %99 : vector<1x32xf32>
    %116 = arith.mulf %111, %113 : vector<1x32xf32>
    %117 = arith.addf %115, %116 : vector<1x32xf32>
    %118 = math.tanh %117 : vector<1x32xf32>
    %119 = arith.mulf %114, %118 : vector<1x32xf32>
    %120 = vector.extract_strided_slice %9 {offsets = [6, 0], sizes = [1, 128], strides = [1, 1]} : vector<8x128xf32> to vector<1x128xf32>
    %cst_20 = arith.constant dense<0.000000e+00> : vector<1x128xf32>
    %121 = tpu.matmul %119, %0, %cst_20 {dimension_numbers = #tpu.dot_dimension_numbers<[1], [0], [0], [1], [0, 0, 1, 1], [], []>} : vector<1x32xf32>, vector<32x128xf32>, vector<1x128xf32> -> vector<1x128xf32>
    %122 = arith.addf %120, %121 : vector<1x128xf32>
    %123 = arith.negf %122 : vector<1x128xf32>
    %124 = math.exp %123 : vector<1x128xf32>
    %cst_21 = arith.constant 1.000000e+00 : f32
    %125 = vector.broadcast %cst_21 : f32 to vector<1x128xf32>
    %126 = arith.addf %125, %124 : vector<1x128xf32>
    %127 = arith.divf %125, %126 : vector<1x128xf32>
    %128 = math.tanh %122 : vector<1x128xf32>
    %129 = vector.extract_strided_slice %127 {offsets = [0, 0], sizes = [1, 32], strides = [1, 1]} : vector<1x128xf32> to vector<1x32xf32>
    %130 = vector.extract_strided_slice %127 {offsets = [0, 32], sizes = [1, 32], strides = [1, 1]} : vector<1x128xf32> to vector<1x32xf32>
    %131 = vector.extract_strided_slice %128 {offsets = [0, 64], sizes = [1, 32], strides = [1, 1]} : vector<1x128xf32> to vector<1x32xf32>
    %132 = vector.extract_strided_slice %127 {offsets = [0, 96], sizes = [1, 32], strides = [1, 1]} : vector<1x128xf32> to vector<1x32xf32>
    %133 = arith.mulf %130, %117 : vector<1x32xf32>
    %134 = arith.mulf %129, %131 : vector<1x32xf32>
    %135 = arith.addf %133, %134 : vector<1x32xf32>
    %136 = math.tanh %135 : vector<1x32xf32>
    %137 = arith.mulf %132, %136 : vector<1x32xf32>
    %138 = vector.extract_strided_slice %9 {offsets = [7, 0], sizes = [1, 128], strides = [1, 1]} : vector<8x128xf32> to vector<1x128xf32>
    %cst_22 = arith.constant dense<0.000000e+00> : vector<1x128xf32>
    %139 = tpu.matmul %137, %0, %cst_22 {dimension_numbers = #tpu.dot_dimension_numbers<[1], [0], [0], [1], [0, 0, 1, 1], [], []>} : vector<1x32xf32>, vector<32x128xf32>, vector<1x128xf32> -> vector<1x128xf32>
    %140 = arith.addf %138, %139 : vector<1x128xf32>
    %141 = arith.negf %140 : vector<1x128xf32>
    %142 = math.exp %141 : vector<1x128xf32>
    %cst_23 = arith.constant 1.000000e+00 : f32
    %143 = vector.broadcast %cst_23 : f32 to vector<1x128xf32>
    %144 = arith.addf %143, %142 : vector<1x128xf32>
    %145 = arith.divf %143, %144 : vector<1x128xf32>
    %146 = math.tanh %140 : vector<1x128xf32>
    %147 = vector.extract_strided_slice %145 {offsets = [0, 0], sizes = [1, 32], strides = [1, 1]} : vector<1x128xf32> to vector<1x32xf32>
    %148 = vector.extract_strided_slice %145 {offsets = [0, 32], sizes = [1, 32], strides = [1, 1]} : vector<1x128xf32> to vector<1x32xf32>
    %149 = vector.extract_strided_slice %146 {offsets = [0, 64], sizes = [1, 32], strides = [1, 1]} : vector<1x128xf32> to vector<1x32xf32>
    %150 = vector.extract_strided_slice %145 {offsets = [0, 96], sizes = [1, 32], strides = [1, 1]} : vector<1x128xf32> to vector<1x32xf32>
    %151 = arith.mulf %148, %135 : vector<1x32xf32>
    %152 = arith.mulf %147, %149 : vector<1x32xf32>
    %153 = arith.addf %151, %152 : vector<1x32xf32>
    %154 = math.tanh %153 : vector<1x32xf32>
    %155 = arith.mulf %150, %154 : vector<1x32xf32>
    %156 = tpu.concatenate %29, %47, %65, %83, %101, %119, %137, %155 in 0 : vector<1x32xf32>, vector<1x32xf32>, vector<1x32xf32>, vector<1x32xf32>, vector<1x32xf32>, vector<1x32xf32>, vector<1x32xf32>, vector<1x32xf32> -> vector<8x32xf32>
    %157 = vector.broadcast %4 : vector<1x32xf32> to vector<8x32xf32>
    %158 = arith.mulf %156, %157 : vector<8x32xf32>
    %cst_24 = arith.constant dense<0.000000e+00> : vector<8xf32>
    %159 = vector.multi_reduction <add>, %158, %cst_24 [1] : vector<8x32xf32> to vector<8xf32>
    %160 = vector.shape_cast %159 : vector<8xf32> to vector<8x1xf32>
    %161 = vector.broadcast %5 : vector<1x1xf32> to vector<8x1xf32>
    %162 = arith.addf %160, %161 : vector<8x1xf32>
    %c0_25 = arith.constant 0 : index
    %c0_26 = arith.constant 0 : index
    %163 = vector.load %arg2[%c0_25, %c0_26] : memref<8x1xf32, #tpu.memory_space<vmem>>, vector<8x1xf32>
    tpu.vector_store %arg2[%c0_25, %c0_26], %162 {strides = array<i32>} : memref<8x1xf32, #tpu.memory_space<vmem>>, vector<8x1xf32>,
    return
  }
}

</mosaic_0001>

<llo_original>
// kernel: tpu_custom_call.1
$region0: #{tpu_custom_call.1}
  #allocation0 [shape = 'u32[]', space=smem, size = 0x4, offset = 0x4, fixed_abs, tag = 'smem constant byte address 0x4 - core index']
  #allocation1 [shape = 'u32[144,128]{1,0:T(1,128)}', space=vmem, size = 0x12000, scoped, tag = 'internal scratch']
  %s0 = inlined_call_operand.hbm [shape: f32[8,8], index: 0, kind: input, shape index: {}]
  %s1 = inlined_call_operand.hbm [shape: f32[42,128], index: 1, kind: input, shape index: {}]
  %s2 = inlined_call_operand.vmem [shape: f32[8,1], index: 2, kind: output, shape index: {}]
  %s3 = sld [smem:[#allocation0]]
  $region26: #{tpu_custom_call.1} parent=0
    _
  %s5 = ssub.s32 1, %s3
  %s6 = scalar_select 0, %s5, %s3
  $region1: #{tpu_custom_call.1} parent=0
    #allocation2 [shape = 'u8[4096]{0}', space=vmem, size = 0x1000, scoped, tag = 'input window, operand 0, single buffered']
    #allocation3 [shape = 's32[1]{0}', space=sflag, size = 0x4, scoped, tag = 'scoped memory for tpu_custom_call.1']
    #allocation4 [shape = 'u8[24576]{0}', space=vmem, size = 0x6000, scoped, tag = 'input window, operand 1, single buffered']
    #allocation5 [shape = 's32[1]{0}', space=sflag, size = 0x4, scoped, tag = 'scoped memory for tpu_custom_call.1']
    %7 = vsyncpa [#allocation3], 0
    %8 = vsyncpa [#allocation5], 0
    // Predicated region
    $region2: #{tpu_custom_call.1} parent=1 // pred_check
      _
    $region3: #{tpu_custom_call.1} parent=1 // pred_check_branch
      %10 = sbr.rel (0) target = $region5
    $region4: #{tpu_custom_call.1} parent=1 // pred_region
      %s12 = ssub.s32 128, 128
      %13 = vsyncadd [#allocation3], %s12
      %s15 = sshll.u32 [#allocation2], 4
      %s16 = int_to_ptr.vmem [resolvable:$true] %s15
      %18 = dma.hbm_to_vmem [thread:$0]  %s0, 128, %s16, [#allocation3]
    $region5: #{tpu_custom_call.1} parent=1 // pred_fallthru
      _
    // Predicated region
    $region6: #{tpu_custom_call.1} parent=1 // pred_check
      _
    $region7: #{tpu_custom_call.1} parent=1 // pred_check_branch
      %20 = sbr.rel (0) target = $region9
    $region8: #{tpu_custom_call.1} parent=1 // pred_region
      %s22 = ssub.s32 768, 768
      %23 = vsyncadd [#allocation5], %s22
      %s24 = sshll.u32 [#allocation4], 4
      %s25 = int_to_ptr.vmem [resolvable:$true] %s24
      %30 = dma.hbm_to_vmem [thread:$0]  %s1, 768, %s25, [#allocation5], 128, 128, 8
    $region9: #{tpu_custom_call.1} parent=1 // pred_fallthru
      _
    // Predicated region
    $region10: #{tpu_custom_call.1} parent=1 // pred_check
      _
    $region11: #{tpu_custom_call.1} parent=1 // pred_check_branch
      %32 = sbr.rel (0) target = $region13
    $region12: #{tpu_custom_call.1} parent=1 // pred_region
      %33 = dma.done [#allocation3], 128
    $region13: #{tpu_custom_call.1} parent=1 // pred_fallthru
      _
    // Predicated region
    $region14: #{tpu_custom_call.1} parent=1 // pred_check
      _
    $region15: #{tpu_custom_call.1} parent=1 // pred_check_branch
      %35 = sbr.rel (0) target = $region17
    $region16: #{tpu_custom_call.1} parent=1 // pred_region
      %36 = dma.done [#allocation5], 768
    $region17: #{tpu_custom_call.1} parent=1 // pred_fallthru
      _
    %v37 = vld [vmem:[#allocation4] sm:$0xff]
    %v38 = vld [vmem:[#allocation4 + $0x8] sm:$0xff]
    %v39 = vld [vmem:[#allocation4 + $0x10] sm:$0xff]
    %v40 = vld [vmem:[#allocation4 + $0x18] sm:$0xff]
    %v41 = vld [vmem:[#allocation4 + $0x20] sm:$0xff]
    %v42 = vld [vmem:[#allocation4 + $0x28] sm:$0x1]
    %v43 = vld [vmem:[#allocation4 + $0x29] sm:$0x1]
    %v44 = vld [vmem:[#allocation2] sm:$0xff]
    %v45 = vlaneseq
    %v46 = vshrl.u32 %v45, 7
    %v47 = vsub.s32 0, %v46
    %v48 = vrot.slane %v42, %v47
    %vm49 = vcmask 64512
    %v51 = vsel %vm49, %v44, 0
    %53 = vmatprep.subr.mxu0 0.0
    %54 = vmatpush1.msra.mxu0 %v41
    %55 = vmatprep.subr.mxu0 0.0
    %56 = vmatpush1.msra.mxu0 0.0
    %57 = vmatprep.subr.mxu0 0.0
    %58 = vmatpush1.msra.mxu0 0.0
    %59 = vmatprep.subr.mxu0 0.0
    %60 = vmatpush1.msra.mxu0 0.0
    %61 = vmatprep.subr.mxu0 0.0
    %62 = vmatpush1.msra.mxu0 0.0
    %63 = vmatprep.subr.mxu0 0.0
    %64 = vmatpush1.msra.mxu0 0.0
    %65 = vmatprep.subr.mxu0 0.0
    %66 = vmatpush1.msra.mxu0 0.0
    %67 = vmatprep.subr.mxu0 0.0
    %68 = vmatpush1.msra.mxu0 0.0
    %69 = vmatprep.subr.mxu0 0.0
    %70 = vmatpush1.msra.mxu0 0.0
    %71 = vmatprep.subr.mxu0 0.0
    %72 = vmatpush1.msra.mxu0 0.0
    %73 = vmatprep.subr.mxu0 0.0
    %74 = vmatpush1.msra.mxu0 0.0
    %75 = vmatprep.subr.mxu0 0.0
    %76 = vmatpush1.msra.mxu0 0.0
    %77 = vmatprep.subr.mxu0 0.0
    %78 = vmatpush1.msra.mxu0 0.0
    %79 = vmatprep.subr.mxu0 0.0
    %80 = vmatpush1.msra.mxu0 0.0
    %81 = vmatprep.subr.mxu0 0.0
    %82 = vmatpush1.msra.mxu0 0.0
    %83 = vmatprep.subr.mxu0 0.0
    %84 = vmatpush1.msra.mxu0 0.0
    %85 = vmatprep.subr.mxu0 0.0
    %86 = vmatpush1.msra.mxu0 0.0
    %87 = vmatprep.subr.mxu0 0.0
    %88 = vmatpush1.msra.mxu0 0.0
    %89 = vmatprep.subr.mxu0 0.0
    %90 = vmatpush1.msra.mxu0 0.0
    %91 = vmatprep.subr.mxu0 0.0
    %92 = vmatpush1.msra.mxu0 0.0
    %93 = vmatprep.subr.mxu0 0.0
    %94 = vmatpush1.msra.mxu0 0.0
    %95 = vmatprep.subr.mxu0 0.0
    %96 = vmatpush1.msra.mxu0 0.0
    %97 = vmatprep.subr.mxu0 0.0
    %98 = vmatpush1.msra.mxu0 0.0
    %99 = vmatprep.subr.mxu0 0.0
    %100 = vmatpush1.msra.mxu0 0.0
    %101 = vmatprep.subr.mxu0 0.0
    %102 = vmatpush1.msra.mxu0 0.0
    %103 = vmatprep.subr.mxu0 0.0
    %104 = vmatpush1.msra.mxu0 0.0
    %105 = vmatprep.subr.mxu0 0.0
    %106 = vmatpush1.msra.mxu0 0.0
    %107 = vmatprep.subr.mxu0 0.0
    %108 = vmatpush1.msra.mxu0 0.0
    %109 = vmatprep.subr.mxu0 0.0
    %110 = vmatpush1.msra.mxu0 0.0
    %111 = vmatprep.subr.mxu0 0.0
    %112 = vmatpush1.msra.mxu0 0.0
    %113 = vmatprep.subr.mxu0 0.0
    %114 = vmatpush1.msra.mxu0 0.0
    %115 = vmatprep.subr.mxu0 0.0
    %116 = vmatpush1.msra.mxu0 0.0
    %117 = vmatprep.mubr.f32.mxu0 0.0
    %118 = vmatmul.mubr.f32.gmra.mrb[0].mxu0 %v51
    %v119 = vpop.f32.mrb[0].mxu0
    %v120 = vadd.f32 %v48, %v119
    %v121 = vpop.f32.mrb[0].mxu0
    %122 = vdwg.mxu0
    %vm123 = vcmask 261120
    %v125 = vsel %vm123, 0.0, 0
    %127 = vmatprep.subr.mxu0 0.0
    %128 = vmatpush1.msra.mxu0 %v37
    %129 = vmatprep.subr.mxu0 0.0
    %130 = vmatpush1.msra.mxu0 %v38
    %131 = vmatprep.subr.mxu0 0.0
    %132 = vmatpush1.msra.mxu0 %v39
    %133 = vmatprep.subr.mxu0 0.0
    %134 = vmatpush1.msra.mxu0 %v40
    %135 = vmatprep.subr.mxu0 0.0
    %136 = vmatpush1.msra.mxu0 0.0
    %137 = vmatprep.subr.mxu0 0.0
    %138 = vmatpush1.msra.mxu0 0.0
    %139 = vmatprep.subr.mxu0 0.0
    %140 = vmatpush1.msra.mxu0 0.0
    %141 = vmatprep.subr.mxu0 0.0
    %142 = vmatpush1.msra.mxu0 0.0
    %143 = vmatprep.subr.mxu0 0.0
    %144 = vmatpush1.msra.mxu0 0.0
    %145 = vmatprep.subr.mxu0 0.0
    %146 = vmatpush1.msra.mxu0 0.0
    %147 = vmatprep.subr.mxu0 0.0
    %148 = vmatpush1.msra.mxu0 0.0
    %149 = vmatprep.subr.mxu0 0.0
    %150 = vmatpush1.msra.mxu0 0.0
    %151 = vmatprep.subr.mxu0 0.0
    %152 = vmatpush1.msra.mxu0 0.0
    %153 = vmatprep.subr.mxu0 0.0
    %154 = vmatpush1.msra.mxu0 0.0
    %155 = vmatprep.subr.mxu0 0.0
    %156 = vmatpush1.msra.mxu0 0.0
    %157 = vmatprep.subr.mxu0 0.0
    %158 = vmatpush1.msra.mxu0 0.0
    %159 = vmatprep.subr.mxu0 0.0
    %160 = vmatpush1.msra.mxu0 0.0
    %161 = vmatprep.subr.mxu0 0.0
    %162 = vmatpush1.msra.mxu0 0.0
    %163 = vmatprep.subr.mxu0 0.0
    %164 = vmatpush1.msra.mxu0 0.0
    %165 = vmatprep.subr.mxu0 0.0
    %166 = vmatpush1.msra.mxu0 0.0
    %167 = vmatprep.subr.mxu0 0.0
    %168 = vmatpush1.msra.mxu0 0.0
    %169 = vmatprep.subr.mxu0 0.0
    %170 = vmatpush1.msra.mxu0 0.0
    %171 = vmatprep.subr.mxu0 0.0
    %172 = vmatpush1.msra.mxu0 0.0
    %173 = vmatprep.subr.mxu0 0.0
    %174 = vmatpush1.msra.mxu0 0.0
    %175 = vmatprep.subr.mxu0 0.0
    %176 = vmatpush1.msra.mxu0 0.0
    %177 = vmatprep.subr.mxu0 0.0
    %178 = vmatpush1.msra.mxu0 0.0
    %179 = vmatprep.subr.mxu0 0.0
    %180 = vmatpush1.msra.mxu0 0.0
    %181 = vmatprep.subr.mxu0 0.0
    %182 = vmatpush1.msra.mxu0 0.0
    %183 = vmatprep.subr.mxu0 0.0
    %184 = vmatpush1.msra.mxu0 0.0
    %185 = vmatprep.subr.mxu0 0.0
    %186 = vmatpush1.msra.mxu0 0.0
    %187 = vmatprep.subr.mxu0 0.0
    %188 = vmatpush1.msra.mxu0 0.0
    %189 = vmatprep.subr.mxu0 0.0
    %190 = vmatpush1.msra.mxu0 0.0
    %191 = vmatprep.mubr.f32.mxu0 0.0
    %192 = vmatmul.mubr.f32.gmra.mrb[0].mxu0 %v125
    %v193 = vpop.f32.mrb[0].mxu0
    %v194 = vadd.f32 0.0, %v193
    %v195 = vpop.f32.mrb[0].mxu0
    %196 = vdwg.mxu0
    %v197 = vadd.f32 %v120, %v194
    %v198 = vxor.u32 %v197, 2147483648
    %v199 = vmul.f32 %v198, 1.442695
    %v200 = vpow.pop %v199
    %v201 = vadd.f32 %v200, 1.0
    %v202 = vrcp.pop %v201
    %v203 = vmul.f32 1.0, %v202
    %v204 = vtanh.pop %v197
    %v205 = vmul.f32 %v203, 0.0
    %207 = vrot.lane.b32.xlu0 %v204, 64
    %v208 = vpop.permute.xlu0 %207
    %v210 = vmul.f32 %v203, %v208
    %212 = vrot.lane.b32.xlu0 %v210, 32
    %v213 = vpop.permute.xlu0 %212
    %v215 = vadd.f32 %v205, %v213
    %v216 = vtanh.pop %v215
    %218 = vrot.lane.b32.xlu0 %v216, 64
    %v219 = vpop.permute.xlu0 %218
    %v221 = vmul.f32 %v203, %v219
    %223 = vrot.lane.b32.xlu0 %v221, 32
    %v224 = vpop.permute.xlu0 %223
    %v225 = vsel %vm123, %v224, 0
    %227 = vmatprep.subr.mxu0 0.0
    %228 = vmatpush1.msra.mxu0 %v37
    %229 = vmatprep.subr.mxu0 0.0
    %230 = vmatpush1.msra.mxu0 %v38
    %231 = vmatprep.subr.mxu0 0.0
    %232 = vmatpush1.msra.mxu0 %v39
    %233 = vmatprep.subr.mxu0 0.0
    %234 = vmatpush1.msra.mxu0 %v40
    %235 = vmatprep.subr.mxu0 0.0
    %236 = vmatpush1.msra.mxu0 0.0
    %237 = vmatprep.subr.mxu0 0.0
    %238 = vmatpush1.msra.mxu0 0.0
    %239 = vmatprep.subr.mxu0 0.0
    %240 = vmatpush1.msra.mxu0 0.0
    %241 = vmatprep.subr.mxu0 0.0
    %242 = vmatpush1.msra.mxu0 0.0
    %243 = vmatprep.subr.mxu0 0.0
    %244 = vmatpush1.msra.mxu0 0.0
    %245 = vmatprep.subr.mxu0 0.0
    %246 = vmatpush1.msra.mxu0 0.0
    %247 = vmatprep.subr.mxu0 0.0
    %248 = vmatpush1.msra.mxu0 0.0
    %249 = vmatprep.subr.mxu0 0.0
    %250 = vmatpush1.msra.mxu0 0.0
    %251 = vmatprep.subr.mxu0 0.0
    %252 = vmatpush1.msra.mxu0 0.0
    %253 = vmatprep.subr.mxu0 0.0
    %254 = vmatpush1.msra.mxu0 0.0
    %255 = vmatprep.subr.mxu0 0.0
    %256 = vmatpush1.msra.mxu0 0.0
    %257 = vmatprep.subr.mxu0 0.0
    %258 = vmatpush1.msra.mxu0 0.0
    %259 = vmatprep.subr.mxu0 0.0
    %260 = vmatpush1.msra.mxu0 0.0
    %261 = vmatprep.subr.mxu0 0.0
    %262 = vmatpush1.msra.mxu0 0.0
    %263 = vmatprep.subr.mxu0 0.0
    %264 = vmatpush1.msra.mxu0 0.0
    %265 = vmatprep.subr.mxu0 0.0
    %266 = vmatpush1.msra.mxu0 0.0
    %267 = vmatprep.subr.mxu0 0.0
    %268 = vmatpush1.msra.mxu0 0.0
    %269 = vmatprep.subr.mxu0 0.0
    %270 = vmatpush1.msra.mxu0 0.0
    %271 = vmatprep.subr.mxu0 0.0
    %272 = vmatpush1.msra.mxu0 0.0
    %273 = vmatprep.subr.mxu0 0.0
    %274 = vmatpush1.msra.mxu0 0.0
    %275 = vmatprep.subr.mxu0 0.0
    %276 = vmatpush1.msra.mxu0 0.0
    %277 = vmatprep.subr.mxu0 0.0
    %278 = vmatpush1.msra.mxu0 0.0
    %279 = vmatprep.subr.mxu0 0.0
    %280 = vmatpush1.msra.mxu0 0.0
    %281 = vmatprep.subr.mxu0 0.0
    %282 = vmatpush1.msra.mxu0 0.0
    %283 = vmatprep.subr.mxu0 0.0
    %284 = vmatpush1.msra.mxu0 0.0
    %285 = vmatprep.subr.mxu0 0.0
    %286 = vmatpush1.msra.mxu0 0.0
    %287 = vmatprep.subr.mxu0 0.0
    %288 = vmatpush1.msra.mxu0 0.0
    %289 = vmatprep.subr.mxu0 0.0
    %290 = vmatpush1.msra.mxu0 0.0
    %291 = vmatprep.mubr.f32.mxu0 0.0
    %292 = vmatmul.mubr.f32.gmra.mrb[0].mxu0 %v225
    %v293 = vpop.f32.mrb[0].mxu0
    %v294 = vadd.f32 0.0, %v293
    %v295 = vpop.f32.mrb[0].mxu0
    %296 = vdwg.mxu0
    %v298 = vrot.slane %v294, 7
    %v300 = vadd.f32 %v120, %v298
    %v301 = vxor.u32 %v300, 2147483648
    %v302 = vmul.f32 %v301, 1.442695
    %v303 = vpow.pop %v302
    %v304 = vadd.f32 %v303, 1.0
    %v305 = vrcp.pop %v304
    %v306 = vmul.f32 1.0, %v305
    %v307 = vtanh.pop %v300
    %v309 = vrot.slane %v215, 7
    %v311 = vmul.f32 %v306, %v309
    %313 = vrot.lane.b32.xlu0 %v307, 64
    %v314 = vpop.permute.xlu0 %313
    %v316 = vmul.f32 %v306, %v314
    %318 = vrot.lane.b32.xlu0 %v316, 32
    %v319 = vpop.permute.xlu0 %318
    %v321 = vadd.f32 %v311, %v319
    %v322 = vtanh.pop %v321
    %324 = vrot.lane.b32.xlu0 %v322, 64
    %v325 = vpop.permute.xlu0 %324
    %v327 = vmul.f32 %v306, %v325
    %v329 = vrot.slane %v327, 1
    %330 = vrot.lane.b32.xlu0 %v329, 32
    %v331 = vpop.permute.xlu0 %330
    %v332 = vsel %vm123, %v331, 0
    %334 = vmatprep.subr.mxu0 0.0
    %335 = vmatpush1.msra.mxu0 %v37
    %336 = vmatprep.subr.mxu0 0.0
    %337 = vmatpush1.msra.mxu0 %v38
    %338 = vmatprep.subr.mxu0 0.0
    %339 = vmatpush1.msra.mxu0 %v39
    %340 = vmatprep.subr.mxu0 0.0
    %341 = vmatpush1.msra.mxu0 %v40
    %342 = vmatprep.subr.mxu0 0.0
    %343 = vmatpush1.msra.mxu0 0.0
    %344 = vmatprep.subr.mxu0 0.0
    %345 = vmatpush1.msra.mxu0 0.0
    %346 = vmatprep.subr.mxu0 0.0
    %347 = vmatpush1.msra.mxu0 0.0
    %348 = vmatprep.subr.mxu0 0.0
    %349 = vmatpush1.msra.mxu0 0.0
    %350 = vmatprep.subr.mxu0 0.0
    %351 = vmatpush1.msra.mxu0 0.0
    %352 = vmatprep.subr.mxu0 0.0
    %353 = vmatpush1.msra.mxu0 0.0
    %354 = vmatprep.subr.mxu0 0.0
    %355 = vmatpush1.msra.mxu0 0.0
    %356 = vmatprep.subr.mxu0 0.0
    %357 = vmatpush1.msra.mxu0 0.0
    %358 = vmatprep.subr.mxu0 0.0
    %359 = vmatpush1.msra.mxu0 0.0
    %360 = vmatprep.subr.mxu0 0.0
    %361 = vmatpush1.msra.mxu0 0.0
    %362 = vmatprep.subr.mxu0 0.0
    %363 = vmatpush1.msra.mxu0 0.0
    %364 = vmatprep.subr.mxu0 0.0
    %365 = vmatpush1.msra.mxu0 0.0
    %366 = vmatprep.subr.mxu0 0.0
    %367 = vmatpush1.msra.mxu0 0.0
    %368 = vmatprep.subr.mxu0 0.0
    %369 = vmatpush1.msra.mxu0 0.0
    %370 = vmatprep.subr.mxu0 0.0
    %371 = vmatpush1.msra.mxu0 0.0
    %372 = vmatprep.subr.mxu0 0.0
    %373 = vmatpush1.msra.mxu0 0.0
    %374 = vmatprep.subr.mxu0 0.0
    %375 = vmatpush1.msra.mxu0 0.0
    %376 = vmatprep.subr.mxu0 0.0
    %377 = vmatpush1.msra.mxu0 0.0
    %378 = vmatprep.subr.mxu0 0.0
    %379 = vmatpush1.msra.mxu0 0.0
    %380 = vmatprep.subr.mxu0 0.0
    %381 = vmatpush1.msra.mxu0 0.0
    %382 = vmatprep.subr.mxu0 0.0
    %383 = vmatpush1.msra.mxu0 0.0
    %384 = vmatprep.subr.mxu0 0.0
    %385 = vmatpush1.msra.mxu0 0.0
    %386 = vmatprep.subr.mxu0 0.0
    %387 = vmatpush1.msra.mxu0 0.0
    %388 = vmatprep.subr.mxu0 0.0
    %389 = vmatpush1.msra.mxu0 0.0
    %390 = vmatprep.subr.mxu0 0.0
    %391 = vmatpush1.msra.mxu0 0.0
    %392 = vmatprep.subr.mxu0 0.0
    %393 = vmatpush1.msra.mxu0 0.0
    %394 = vmatprep.subr.mxu0 0.0
    %395 = vmatpush1.msra.mxu0 0.0
    %396 = vmatprep.subr.mxu0 0.0
    %397 = vmatpush1.msra.mxu0 0.0
    %398 = vmatprep.mubr.f32.mxu0 0.0
    %399 = vmatmul.mubr.f32.gmra.mrb[0].mxu0 %v332
    %v400 = vpop.f32.mrb[0].mxu0
    %v401 = vadd.f32 0.0, %v400
    %v402 = vpop.f32.mrb[0].mxu0
    %403 = vdwg.mxu0
    %v405 = vrot.slane %v401, 6
    %v407 = vadd.f32 %v120, %v405
    %v408 = vxor.u32 %v407, 2147483648
    %v409 = vmul.f32 %v408, 1.442695
    %v410 = vpow.pop %v409
    %v411 = vadd.f32 %v410, 1.0
    %v412 = vrcp.pop %v411
    %v413 = vmul.f32 1.0, %v412
    %v414 = vtanh.pop %v407
    %v416 = vrot.slane %v321, 7
    %v418 = vmul.f32 %v413, %v416
    %420 = vrot.lane.b32.xlu0 %v414, 64
    %v421 = vpop.permute.xlu0 %420
    %v423 = vmul.f32 %v413, %v421
    %425 = vrot.lane.b32.xlu0 %v423, 32
    %v426 = vpop.permute.xlu0 %425
    %v428 = vadd.f32 %v418, %v426
    %v429 = vtanh.pop %v428
    %431 = vrot.lane.b32.xlu0 %v429, 64
    %v432 = vpop.permute.xlu0 %431
    %v434 = vmul.f32 %v413, %v432
    %v436 = vrot.slane %v434, 2
    %437 = vrot.lane.b32.xlu0 %v436, 32
    %v438 = vpop.permute.xlu0 %437
    %v439 = vsel %vm123, %v438, 0
    %441 = vmatprep.subr.mxu0 0.0
    %442 = vmatpush1.msra.mxu0 %v37
    %443 = vmatprep.subr.mxu0 0.0
    %444 = vmatpush1.msra.mxu0 %v38
    %445 = vmatprep.subr.mxu0 0.0
    %446 = vmatpush1.msra.mxu0 %v39
    %447 = vmatprep.subr.mxu0 0.0
    %448 = vmatpush1.msra.mxu0 %v40
    %449 = vmatprep.subr.mxu0 0.0
    %450 = vmatpush1.msra.mxu0 0.0
    %451 = vmatprep.subr.mxu0 0.0
    %452 = vmatpush1.msra.mxu0 0.0
    %453 = vmatprep.subr.mxu0 0.0
    %454 = vmatpush1.msra.mxu0 0.0
    %455 = vmatprep.subr.mxu0 0.0
    %456 = vmatpush1.msra.mxu0 0.0
    %457 = vmatprep.subr.mxu0 0.0
    %458 = vmatpush1.msra.mxu0 0.0
    %459 = vmatprep.subr.mxu0 0.0
    %460 = vmatpush1.msra.mxu0 0.0
    %461 = vmatprep.subr.mxu0 0.0
    %462 = vmatpush1.msra.mxu0 0.0
    %463 = vmatprep.subr.mxu0 0.0
    %464 = vmatpush1.msra.mxu0 0.0
    %465 = vmatprep.subr.mxu0 0.0
    %466 = vmatpush1.msra.mxu0 0.0
    %467 = vmatprep.subr.mxu0 0.0
    %468 = vmatpush1.msra.mxu0 0.0
    %469 = vmatprep.subr.mxu0 0.0
    %470 = vmatpush1.msra.mxu0 0.0
    %471 = vmatprep.subr.mxu0 0.0
    %472 = vmatpush1.msra.mxu0 0.0
    %473 = vmatprep.subr.mxu0 0.0
    %474 = vmatpush1.msra.mxu0 0.0
    %475 = vmatprep.subr.mxu0 0.0
    %476 = vmatpush1.msra.mxu0 0.0
    %477 = vmatprep.subr.mxu0 0.0
    %478 = vmatpush1.msra.mxu0 0.0
    %479 = vmatprep.subr.mxu0 0.0
    %480 = vmatpush1.msra.mxu0 0.0
    %481 = vmatprep.subr.mxu0 0.0
    %482 = vmatpush1.msra.mxu0 0.0
    %483 = vmatprep.subr.mxu0 0.0
    %484 = vmatpush1.msra.mxu0 0.0
    %485 = vmatprep.subr.mxu0 0.0
    %486 = vmatpush1.msra.mxu0 0.0
    %487 = vmatprep.subr.mxu0 0.0
    %488 = vmatpush1.msra.mxu0 0.0
    %489 = vmatprep.subr.mxu0 0.0
    %490 = vmatpush1.msra.mxu0 0.0
    %491 = vmatprep.subr.mxu0 0.0
    %492 = vmatpush1.msra.mxu0 0.0
    %493 = vmatprep.subr.mxu0 0.0
    %494 = vmatpush1.msra.mxu0 0.0
    %495 = vmatprep.subr.mxu0 0.0
    %496 = vmatpush1.msra.mxu0 0.0
    %497 = vmatprep.subr.mxu0 0.0
    %498 = vmatpush1.msra.mxu0 0.0
    %499 = vmatprep.subr.mxu0 0.0
    %500 = vmatpush1.msra.mxu0 0.0
    %501 = vmatprep.subr.mxu0 0.0
    %502 = vmatpush1.msra.mxu0 0.0
    %503 = vmatprep.subr.mxu0 0.0
    %504 = vmatpush1.msra.mxu0 0.0
    %505 = vmatprep.mubr.f32.mxu0 0.0
    %506 = vmatmul.mubr.f32.gmra.mrb[0].mxu0 %v439
    %v507 = vpop.f32.mrb[0].mxu0
    %v508 = vadd.f32 0.0, %v507
    %v509 = vpop.f32.mrb[0].mxu0
    %510 = vdwg.mxu0
    %v512 = vrot.slane %v508, 5
    %v514 = vadd.f32 %v120, %v512
    %v515 = vxor.u32 %v514, 2147483648
    %v516 = vmul.f32 %v515, 1.442695
    %v517 = vpow.pop %v516
    %v518 = vadd.f32 %v517, 1.0
    %v519 = vrcp.pop %v518
    %v520 = vmul.f32 1.0, %v519
    %v521 = vtanh.pop %v514
    %v523 = vrot.slane %v428, 7
    %v525 = vmul.f32 %v520, %v523
    %527 = vrot.lane.b32.xlu0 %v521, 64
    %v528 = vpop.permute.xlu0 %527
    %v530 = vmul.f32 %v520, %v528
    %532 = vrot.lane.b32.xlu0 %v530, 32
    %v533 = vpop.permute.xlu0 %532
    %v535 = vadd.f32 %v525, %v533
    %v536 = vtanh.pop %v535
    %538 = vrot.lane.b32.xlu0 %v536, 64
    %v539 = vpop.permute.xlu0 %538
    %v541 = vmul.f32 %v520, %v539
    %v543 = vrot.slane %v541, 3
    %544 = vrot.lane.b32.xlu0 %v543, 32
    %v545 = vpop.permute.xlu0 %544
    %v546 = vsel %vm123, %v545, 0
    %548 = vmatprep.subr.mxu0 0.0
    %549 = vmatpush1.msra.mxu0 %v37
    %550 = vmatprep.subr.mxu0 0.0
    %551 = vmatpush1.msra.mxu0 %v38
    %552 = vmatprep.subr.mxu0 0.0
    %553 = vmatpush1.msra.mxu0 %v39
    %554 = vmatprep.subr.mxu0 0.0
    %555 = vmatpush1.msra.mxu0 %v40
    %556 = vmatprep.subr.mxu0 0.0
    %557 = vmatpush1.msra.mxu0 0.0
    %558 = vmatprep.subr.mxu0 0.0
    %559 = vmatpush1.msra.mxu0 0.0
    %560 = vmatprep.subr.mxu0 0.0
    %561 = vmatpush1.msra.mxu0 0.0
    %562 = vmatprep.subr.mxu0 0.0
    %563 = vmatpush1.msra.mxu0 0.0
    %564 = vmatprep.subr.mxu0 0.0
    %565 = vmatpush1.msra.mxu0 0.0
    %566 = vmatprep.subr.mxu0 0.0
    %567 = vmatpush1.msra.mxu0 0.0
    %568 = vmatprep.subr.mxu0 0.0
    %569 = vmatpush1.msra.mxu0 0.0
    %570 = vmatprep.subr.mxu0 0.0
    %571 = vmatpush1.msra.mxu0 0.0
    %572 = vmatprep.subr.mxu0 0.0
    %573 = vmatpush1.msra.mxu0 0.0
    %574 = vmatprep.subr.mxu0 0.0
    %575 = vmatpush1.msra.mxu0 0.0
    %576 = vmatprep.subr.mxu0 0.0
    %577 = vmatpush1.msra.mxu0 0.0
    %578 = vmatprep.subr.mxu0 0.0
    %579 = vmatpush1.msra.mxu0 0.0
    %580 = vmatprep.subr.mxu0 0.0
    %581 = vmatpush1.msra.mxu0 0.0
    %582 = vmatprep.subr.mxu0 0.0
    %583 = vmatpush1.msra.mxu0 0.0
    %584 = vmatprep.subr.mxu0 0.0
    %585 = vmatpush1.msra.mxu0 0.0
    %586 = vmatprep.subr.mxu0 0.0
    %587 = vmatpush1.msra.mxu0 0.0
    %588 = vmatprep.subr.mxu0 0.0
    %589 = vmatpush1.msra.mxu0 0.0
    %590 = vmatprep.subr.mxu0 0.0
    %591 = vmatpush1.msra.mxu0 0.0
    %592 = vmatprep.subr.mxu0 0.0
    %593 = vmatpush1.msra.mxu0 0.0
    %594 = vmatprep.subr.mxu0 0.0
    %595 = vmatpush1.msra.mxu0 0.0
    %596 = vmatprep.subr.mxu0 0.0
    %597 = vmatpush1.msra.mxu0 0.0
    %598 = vmatprep.subr.mxu0 0.0
    %599 = vmatpush1.msra.mxu0 0.0
    %600 = vmatprep.subr.mxu0 0.0
    %601 = vmatpush1.msra.mxu0 0.0
    %602 = vmatprep.subr.mxu0 0.0
    %603 = vmatpush1.msra.mxu0 0.0
    %604 = vmatprep.subr.mxu0 0.0
    %605 = vmatpush1.msra.mxu0 0.0
    %606 = vmatprep.subr.mxu0 0.0
    %607 = vmatpush1.msra.mxu0 0.0
    %608 = vmatprep.subr.mxu0 0.0
    %609 = vmatpush1.msra.mxu0 0.0
    %610 = vmatprep.subr.mxu0 0.0
    %611 = vmatpush1.msra.mxu0 0.0
    %612 = vmatprep.mubr.f32.mxu0 0.0
    %613 = vmatmul.mubr.f32.gmra.mrb[0].mxu0 %v546
    %v614 = vpop.f32.mrb[0].mxu0
    %v615 = vadd.f32 0.0, %v614
    %v616 = vpop.f32.mrb[0].mxu0
    %617 = vdwg.mxu0
    %v619 = vrot.slane %v615, 4
    %v621 = vadd.f32 %v120, %v619
    %v622 = vxor.u32 %v621, 2147483648
    %v623 = vmul.f32 %v622, 1.442695
    %v624 = vpow.pop %v623
    %v625 = vadd.f32 %v624, 1.0
    %v626 = vrcp.pop %v625
    %v627 = vmul.f32 1.0, %v626
    %v628 = vtanh.pop %v621
    %v630 = vrot.slane %v535, 7
    %v632 = vmul.f32 %v627, %v630
    %634 = vrot.lane.b32.xlu0 %v628, 64
    %v635 = vpop.permute.xlu0 %634
    %v637 = vmul.f32 %v627, %v635
    %639 = vrot.lane.b32.xlu0 %v637, 32
    %v640 = vpop.permute.xlu0 %639
    %v642 = vadd.f32 %v632, %v640
    %v643 = vtanh.pop %v642
    %645 = vrot.lane.b32.xlu0 %v643, 64
    %v646 = vpop.permute.xlu0 %645
    %v648 = vmul.f32 %v627, %v646
    %v650 = vrot.slane %v648, 4
    %651 = vrot.lane.b32.xlu0 %v650, 32
    %v652 = vpop.permute.xlu0 %651
    %v653 = vsel %vm123, %v652, 0
    %655 = vmatprep.subr.mxu0 0.0
    %656 = vmatpush1.msra.mxu0 %v37
    %657 = vmatprep.subr.mxu0 0.0
    %658 = vmatpush1.msra.mxu0 %v38
    %659 = vmatprep.subr.mxu0 0.0
    %660 = vmatpush1.msra.mxu0 %v39
    %661 = vmatprep.subr.mxu0 0.0
    %662 = vmatpush1.msra.mxu0 %v40
    %663 = vmatprep.subr.mxu0 0.0
    %664 = vmatpush1.msra.mxu0 0.0
    %665 = vmatprep.subr.mxu0 0.0
    %666 = vmatpush1.msra.mxu0 0.0
    %667 = vmatprep.subr.mxu0 0.0
    %668 = vmatpush1.msra.mxu0 0.0
    %669 = vmatprep.subr.mxu0 0.0
    %670 = vmatpush1.msra.mxu0 0.0
    %671 = vmatprep.subr.mxu0 0.0
    %672 = vmatpush1.msra.mxu0 0.0
    %673 = vmatprep.subr.mxu0 0.0
    %674 = vmatpush1.msra.mxu0 0.0
    %675 = vmatprep.subr.mxu0 0.0
    %676 = vmatpush1.msra.mxu0 0.0
    %677 = vmatprep.subr.mxu0 0.0
    %678 = vmatpush1.msra.mxu0 0.0
    %679 = vmatprep.subr.mxu0 0.0
    %680 = vmatpush1.msra.mxu0 0.0
    %681 = vmatprep.subr.mxu0 0.0
    %682 = vmatpush1.msra.mxu0 0.0
    %683 = vmatprep.subr.mxu0 0.0
    %684 = vmatpush1.msra.mxu0 0.0
    %685 = vmatprep.subr.mxu0 0.0
    %686 = vmatpush1.msra.mxu0 0.0
    %687 = vmatprep.subr.mxu0 0.0
    %688 = vmatpush1.msra.mxu0 0.0
    %689 = vmatprep.subr.mxu0 0.0
    %690 = vmatpush1.msra.mxu0 0.0
    %691 = vmatprep.subr.mxu0 0.0
    %692 = vmatpush1.msra.mxu0 0.0
    %693 = vmatprep.subr.mxu0 0.0
    %694 = vmatpush1.msra.mxu0 0.0
    %695 = vmatprep.subr.mxu0 0.0
    %696 = vmatpush1.msra.mxu0 0.0
    %697 = vmatprep.subr.mxu0 0.0
    %698 = vmatpush1.msra.mxu0 0.0
    %699 = vmatprep.subr.mxu0 0.0
    %700 = vmatpush1.msra.mxu0 0.0
    %701 = vmatprep.subr.mxu0 0.0
    %702 = vmatpush1.msra.mxu0 0.0
    %703 = vmatprep.subr.mxu0 0.0
    %704 = vmatpush1.msra.mxu0 0.0
    %705 = vmatprep.subr.mxu0 0.0
    %706 = vmatpush1.msra.mxu0 0.0
    %707 = vmatprep.subr.mxu0 0.0
    %708 = vmatpush1.msra.mxu0 0.0
    %709 = vmatprep.subr.mxu0 0.0
    %710 = vmatpush1.msra.mxu0 0.0
    %711 = vmatprep.subr.mxu0 0.0
    %712 = vmatpush1.msra.mxu0 0.0
    %713 = vmatprep.subr.mxu0 0.0
    %714 = vmatpush1.msra.mxu0 0.0
    %715 = vmatprep.subr.mxu0 0.0
    %716 = vmatpush1.msra.mxu0 0.0
    %717 = vmatprep.subr.mxu0 0.0
    %718 = vmatpush1.msra.mxu0 0.0
    %719 = vmatprep.mubr.f32.mxu0 0.0
    %720 = vmatmul.mubr.f32.gmra.mrb[0].mxu0 %v653
    %v721 = vpop.f32.mrb[0].mxu0
    %v722 = vadd.f32 0.0, %v721
    %v723 = vpop.f32.mrb[0].mxu0
    %724 = vdwg.mxu0
    %v726 = vrot.slane %v722, 3
    %v728 = vadd.f32 %v120, %v726
    %v729 = vxor.u32 %v728, 2147483648
    %v730 = vmul.f32 %v729, 1.442695
    %v731 = vpow.pop %v730
    %v732 = vadd.f32 %v731, 1.0
    %v733 = vrcp.pop %v732
    %v734 = vmul.f32 1.0, %v733
    %v735 = vtanh.pop %v728
    %v737 = vrot.slane %v642, 7
    %v739 = vmul.f32 %v734, %v737
    %741 = vrot.lane.b32.xlu0 %v735, 64
    %v742 = vpop.permute.xlu0 %741
    %v744 = vmul.f32 %v734, %v742
    %746 = vrot.lane.b32.xlu0 %v744, 32
    %v747 = vpop.permute.xlu0 %746
    %v749 = vadd.f32 %v739, %v747
    %v750 = vtanh.pop %v749
    %752 = vrot.lane.b32.xlu0 %v750, 64
    %v753 = vpop.permute.xlu0 %752
    %v755 = vmul.f32 %v734, %v753
    %v757 = vrot.slane %v755, 5
    %758 = vrot.lane.b32.xlu0 %v757, 32
    %v759 = vpop.permute.xlu0 %758
    %v760 = vsel %vm123, %v759, 0
    %762 = vmatprep.subr.mxu0 0.0
    %763 = vmatpush1.msra.mxu0 %v37
    %764 = vmatprep.subr.mxu0 0.0
    %765 = vmatpush1.msra.mxu0 %v38
    %766 = vmatprep.subr.mxu0 0.0
    %767 = vmatpush1.msra.mxu0 %v39
    %768 = vmatprep.subr.mxu0 0.0
    %769 = vmatpush1.msra.mxu0 %v40
    %770 = vmatprep.subr.mxu0 0.0
    %771 = vmatpush1.msra.mxu0 0.0
    %772 = vmatprep.subr.mxu0 0.0
    %773 = vmatpush1.msra.mxu0 0.0
    %774 = vmatprep.subr.mxu0 0.0
    %775 = vmatpush1.msra.mxu0 0.0
    %776 = vmatprep.subr.mxu0 0.0
    %777 = vmatpush1.msra.mxu0 0.0
    %778 = vmatprep.subr.mxu0 0.0
    %779 = vmatpush1.msra.mxu0 0.0
    %780 = vmatprep.subr.mxu0 0.0
    %781 = vmatpush1.msra.mxu0 0.0
    %782 = vmatprep.subr.mxu0 0.0
    %783 = vmatpush1.msra.mxu0 0.0
    %784 = vmatprep.subr.mxu0 0.0
    %785 = vmatpush1.msra.mxu0 0.0
    %786 = vmatprep.subr.mxu0 0.0
    %787 = vmatpush1.msra.mxu0 0.0
    %788 = vmatprep.subr.mxu0 0.0
    %789 = vmatpush1.msra.mxu0 0.0
    %790 = vmatprep.subr.mxu0 0.0
    %791 = vmatpush1.msra.mxu0 0.0
    %792 = vmatprep.subr.mxu0 0.0
    %793 = vmatpush1.msra.mxu0 0.0
    %794 = vmatprep.subr.mxu0 0.0
    %795 = vmatpush1.msra.mxu0 0.0
    %796 = vmatprep.subr.mxu0 0.0
    %797 = vmatpush1.msra.mxu0 0.0
    %798 = vmatprep.subr.mxu0 0.0
    %799 = vmatpush1.msra.mxu0 0.0
    %800 = vmatprep.subr.mxu0 0.0
    %801 = vmatpush1.msra.mxu0 0.0
    %802 = vmatprep.subr.mxu0 0.0
    %803 = vmatpush1.msra.mxu0 0.0
    %804 = vmatprep.subr.mxu0 0.0
    %805 = vmatpush1.msra.mxu0 0.0
    %806 = vmatprep.subr.mxu0 0.0
    %807 = vmatpush1.msra.mxu0 0.0
    %808 = vmatprep.subr.mxu0 0.0
    %809 = vmatpush1.msra.mxu0 0.0
    %810 = vmatprep.subr.mxu0 0.0
    %811 = vmatpush1.msra.mxu0 0.0
    %812 = vmatprep.subr.mxu0 0.0
    %813 = vmatpush1.msra.mxu0 0.0
    %814 = vmatprep.subr.mxu0 0.0
    %815 = vmatpush1.msra.mxu0 0.0
    %816 = vmatprep.subr.mxu0 0.0
    %817 = vmatpush1.msra.mxu0 0.0
    %818 = vmatprep.subr.mxu0 0.0
    %819 = vmatpush1.msra.mxu0 0.0
    %820 = vmatprep.subr.mxu0 0.0
    %821 = vmatpush1.msra.mxu0 0.0
    %822 = vmatprep.subr.mxu0 0.0
    %823 = vmatpush1.msra.mxu0 0.0
    %824 = vmatprep.subr.mxu0 0.0
    %825 = vmatpush1.msra.mxu0 0.0
    %826 = vmatprep.mubr.f32.mxu0 0.0
    %827 = vmatmul.mubr.f32.gmra.mrb[0].mxu0 %v760
    %v828 = vpop.f32.mrb[0].mxu0
    %v829 = vadd.f32 0.0, %v828
    %v830 = vpop.f32.mrb[0].mxu0
    %831 = vdwg.mxu0
    %v833 = vrot.slane %v829, 2
    %v835 = vadd.f32 %v120, %v833
    %v836 = vxor.u32 %v835, 2147483648
    %v837 = vmul.f32 %v836, 1.442695
    %v838 = vpow.pop %v837
    %v839 = vadd.f32 %v838, 1.0
    %v840 = vrcp.pop %v839
    %v841 = vmul.f32 1.0, %v840
    %v842 = vtanh.pop %v835
    %v844 = vrot.slane %v749, 7
    %v846 = vmul.f32 %v841, %v844
    %848 = vrot.lane.b32.xlu0 %v842, 64
    %v849 = vpop.permute.xlu0 %848
    %v851 = vmul.f32 %v841, %v849
    %853 = vrot.lane.b32.xlu0 %v851, 32
    %v854 = vpop.permute.xlu0 %853
    %v856 = vadd.f32 %v846, %v854
    %v857 = vtanh.pop %v856
    %859 = vrot.lane.b32.xlu0 %v857, 64
    %v860 = vpop.permute.xlu0 %859
    %v862 = vmul.f32 %v841, %v860
    %v864 = vrot.slane %v862, 6
    %865 = vrot.lane.b32.xlu0 %v864, 32
    %v866 = vpop.permute.xlu0 %865
    %v867 = vsel %vm123, %v866, 0
    %869 = vmatprep.subr.mxu0 0.0
    %870 = vmatpush1.msra.mxu0 %v37
    %871 = vmatprep.subr.mxu0 0.0
    %872 = vmatpush1.msra.mxu0 %v38
    %873 = vmatprep.subr.mxu0 0.0
    %874 = vmatpush1.msra.mxu0 %v39
    %875 = vmatprep.subr.mxu0 0.0
    %876 = vmatpush1.msra.mxu0 %v40
    %877 = vmatprep.subr.mxu0 0.0
    %878 = vmatpush1.msra.mxu0 0.0
    %879 = vmatprep.subr.mxu0 0.0
    %880 = vmatpush1.msra.mxu0 0.0
    %881 = vmatprep.subr.mxu0 0.0
    %882 = vmatpush1.msra.mxu0 0.0
    %883 = vmatprep.subr.mxu0 0.0
    %884 = vmatpush1.msra.mxu0 0.0
    %885 = vmatprep.subr.mxu0 0.0
    %886 = vmatpush1.msra.mxu0 0.0
    %887 = vmatprep.subr.mxu0 0.0
    %888 = vmatpush1.msra.mxu0 0.0
    %889 = vmatprep.subr.mxu0 0.0
    %890 = vmatpush1.msra.mxu0 0.0
    %891 = vmatprep.subr.mxu0 0.0
    %892 = vmatpush1.msra.mxu0 0.0
    %893 = vmatprep.subr.mxu0 0.0
    %894 = vmatpush1.msra.mxu0 0.0
    %895 = vmatprep.subr.mxu0 0.0
    %896 = vmatpush1.msra.mxu0 0.0
    %897 = vmatprep.subr.mxu0 0.0
    %898 = vmatpush1.msra.mxu0 0.0
    %899 = vmatprep.subr.mxu0 0.0
    %900 = vmatpush1.msra.mxu0 0.0
    %901 = vmatprep.subr.mxu0 0.0
    %902 = vmatpush1.msra.mxu0 0.0
    %903 = vmatprep.subr.mxu0 0.0
    %904 = vmatpush1.msra.mxu0 0.0
    %905 = vmatprep.subr.mxu0 0.0
    %906 = vmatpush1.msra.mxu0 0.0
    %907 = vmatprep.subr.mxu0 0.0
    %908 = vmatpush1.msra.mxu0 0.0
    %909 = vmatprep.subr.mxu0 0.0
    %910 = vmatpush1.msra.mxu0 0.0
    %911 = vmatprep.subr.mxu0 0.0
    %912 = vmatpush1.msra.mxu0 0.0
    %913 = vmatprep.subr.mxu0 0.0
    %914 = vmatpush1.msra.mxu0 0.0
    %915 = vmatprep.subr.mxu0 0.0
    %916 = vmatpush1.msra.mxu0 0.0
    %917 = vmatprep.subr.mxu0 0.0
    %918 = vmatpush1.msra.mxu0 0.0
    %919 = vmatprep.subr.mxu0 0.0
    %920 = vmatpush1.msra.mxu0 0.0
    %921 = vmatprep.subr.mxu0 0.0
    %922 = vmatpush1.msra.mxu0 0.0
    %923 = vmatprep.subr.mxu0 0.0
    %924 = vmatpush1.msra.mxu0 0.0
    %925 = vmatprep.subr.mxu0 0.0
    %926 = vmatpush1.msra.mxu0 0.0
    %927 = vmatprep.subr.mxu0 0.0
    %928 = vmatpush1.msra.mxu0 0.0
    %929 = vmatprep.subr.mxu0 0.0
    %930 = vmatpush1.msra.mxu0 0.0
    %931 = vmatprep.subr.mxu0 0.0
    %932 = vmatpush1.msra.mxu0 0.0
    %933 = vmatprep.mubr.f32.mxu0 0.0
    %934 = vmatmul.mubr.f32.gmra.mrb[0].mxu0 %v867
    %v935 = vpop.f32.mrb[0].mxu0
    %v936 = vadd.f32 0.0, %v935
    %v937 = vpop.f32.mrb[0].mxu0
    %938 = vdwg.mxu0
    %v940 = vrot.slane %v936, 1
    %v942 = vadd.f32 %v120, %v940
    %v943 = vxor.u32 %v942, 2147483648
    %v944 = vmul.f32 %v943, 1.442695
    %v945 = vpow.pop %v944
    %v946 = vadd.f32 %v945, 1.0
    %v947 = vrcp.pop %v946
    %v948 = vmul.f32 1.0, %v947
    %v949 = vtanh.pop %v942
    %v951 = vrot.slane %v856, 7
    %v953 = vmul.f32 %v948, %v951
    %955 = vrot.lane.b32.xlu0 %v949, 64
    %v956 = vpop.permute.xlu0 %955
    %v958 = vmul.f32 %v948, %v956
    %960 = vrot.lane.b32.xlu0 %v958, 32
    %v961 = vpop.permute.xlu0 %960
    %v963 = vadd.f32 %v953, %v961
    %v964 = vtanh.pop %v963
    %966 = vrot.lane.b32.xlu0 %v964, 64
    %v967 = vpop.permute.xlu0 %966
    %v969 = vmul.f32 %v948, %v967
    %vm970 = vcmask 1040384
    %v971 = vsel %vm970, %v221, %v327
    %vm972 = vcmask 1041408
    %v973 = vsel %vm972, %v971, %v434
    %vm974 = vcmask 1042432
    %v975 = vsel %vm974, %v973, %v541
    %vm976 = vcmask 1043456
    %v977 = vsel %vm976, %v975, %v648
    %vm978 = vcmask 1044480
    %v979 = vsel %vm978, %v977, %v755
    %vm980 = vcmask 1045504
    %v981 = vsel %vm980, %v979, %v862
    %vm982 = vcmask 1046528
    %v983 = vsel %vm982, %v981, %v969
    %v984 = vlaneseq
    %v985 = vshrl.u32 %v984, 7
    %v986 = vsub.s32 0, %v985
    %v987 = vrot.slane %v43, %v986
    %989 = vrot.lane.b32.xlu0 %v987, 96
    %v990 = vpop.permute.xlu0 %989
    %v992 = vmul.f32 %v983, %v990
    %994 = vrot.lane.b32.xlu0 %v992, 32
    %v995 = vpop.permute.xlu0 %994
    %v997 = vsel %vm123, %v995, 0.0
    %998 = vadd.xlane.f32.xlu0 %v997
    %v999 = vpop.xlane.xlu0 %998
    %v1000 = vadd.f32 %v999, %v987
    %1002 = vrot.lane.b32.xlu0 %v1000, 96
    %v1003 = vpop.permute.xlu0 %1002
    %vm1005 = vcmask 7168
    %1006 = vst.msk [vmem:[%s2] sm:$0xff] %vm1005, %v1003
    // Predicated region
    $region18: #{tpu_custom_call.1} parent=1 // pred_check
      _
    $region19: #{tpu_custom_call.1} parent=1 // pred_check_branch
      %1008 = sbr.rel (0) target = $region21
    $region20: #{tpu_custom_call.1} parent=1 // pred_region
      _
    $region21: #{tpu_custom_call.1} parent=1 // pred_fallthru
      _
    // Predicated region
    $region22: #{tpu_custom_call.1} parent=1 // pred_check
      _
    $region23: #{tpu_custom_call.1} parent=1 // pred_check_branch
      %1010 = sbr.rel (0) target = $region25
    $region24: #{tpu_custom_call.1} parent=1 // pred_region
      _
    $region25: #{tpu_custom_call.1} parent=1 // pred_fallthru
      _
    %1011 = vsyncpa [#allocation3], 1
    %1012 = vsyncpa [#allocation5], 1

</llo_original>
